<compile_context>
chip_gen: v6e
topology: v6e:2x2x1
jax: 0.10.0
libtpu: 0.0.40
codegen_flags: <defaults>
</compile_context>

<pallas_src>
import jax
import jax.numpy as jnp
from jax.experimental import pallas as pl
from jax.experimental.pallas import tpu as pltpu


# ---------------------------------------------------------------------------
# kernels
# ---------------------------------------------------------------------------
def _masked_tril(w, row, col):
    """Fused L = tril(w) with abs() applied on the diagonal.

    `row` / `col` are GLOBAL element indices of this tile of W.
    Single nested select: strictly-lower passes through, diagonal -> abs,
    strictly-upper -> 0.
    """
    return jnp.where(
        col < row, w, jnp.where(col == row, jnp.abs(w), jnp.zeros_like(w))
    )


def _spd_single_block_kernel(w_ref, o_ref):
    """Whole matrix as one VMEM block (small N)."""
    w = w_ref[...]
    n = w.shape[0]
    row = jax.lax.broadcasted_iota(jnp.int32, (n, n), 0)
    col = jax.lax.broadcasted_iota(jnp.int32, (n, n), 1)
    L = _masked_tril(w, row, col)
    # L @ L.T without materializing a transpose: contract axis 1 of both.
    o_ref[...] = jax.lax.dot_general(
        L, L,
        dimension_numbers=(((1,), (1,)), ((), ())),
        preferred_element_type=jnp.float32,
    ).astype(o_ref.dtype)


def _spd_tiled_kernel(wa_ref, wb_ref, o_ref, acc_ref):
    """One (tile, tile) output block; k (last grid axis) is the contraction."""
    i = pl.program_id(0)   # output block row
    j = pl.program_id(1)   # output block col
    k = pl.program_id(2)   # contraction block
    t = acc_ref.shape[0]

    @pl.when(k == 0)
    def _init():
        acc_ref[...] = jnp.zeros_like(acc_ref)

    # L is lower triangular: L-block (r, k) == 0 for k > r, and the output is
    # symmetric, so only blocks with j <= i are computed (strict upper block
    # triangle stays zero and is mirrored in the wrapper).  Hence only
    # k <= j <= i contributes.
    @pl.when((j <= i) & (k <= j))
    def _compute():
        row_l = jax.lax.broadcasted_iota(jnp.int32, (t, t), 0)
        col_l = jax.lax.broadcasted_iota(jnp.int32, (t, t), 1)
        col_g = k * t + col_l                      # global column index in W
        la = _masked_tril(wa_ref[...], i * t + row_l, col_g)   # W block (i, k)
        lb = _masked_tril(wb_ref[...], j * t + row_l, col_g)   # W block (j, k)
        acc_ref[...] += jax.lax.dot_general(
            la, lb,
            dimension_numbers=(((1,), (1,)), ((), ())),
            preferred_element_type=jnp.float32,
        )

    @pl.when(k == pl.num_programs(2) - 1)
    def _store():
        o_ref[...] = acc_ref[...].astype(o_ref.dtype)


# ---------------------------------------------------------------------------
# wrappers
# ---------------------------------------------------------------------------
def _spd_single_block(W):
    n = W.shape[0]
    vmem = pltpu.MemorySpace.VMEM
    return pl.pallas_call(
        _spd_single_block_kernel,
        out_shape=jax.ShapeDtypeStruct((n, n), W.dtype),
        in_specs=[pl.BlockSpec((n, n), lambda: (0, 0), memory_space=vmem)],
        out_specs=pl.BlockSpec((n, n), lambda: (0, 0), memory_space=vmem),
    )(W)


def _spd_tiled(W, tile):
    n = W.shape[0]
    assert n % tile == 0 and tile % 128 == 0
    g = n // tile
    vmem = pltpu.MemorySpace.VMEM

    def _clamped_k(i, j, k):
        # Computed steps have k <= j <= i.  Skipped / trimmed steps are
        # clamped onto an already-resident block index so no DMA is issued.
        return jnp.minimum(k, j) * (j <= i)

    lhs_spec = pl.BlockSpec(
        (tile, tile), lambda i, j, k: (i, _clamped_k(i, j, k)), memory_space=vmem)
    rhs_spec = pl.BlockSpec(
        (tile, tile), lambda i, j, k: (j, _clamped_k(i, j, k)), memory_space=vmem)
    out_spec = pl.BlockSpec(
        (tile, tile), lambda i, j, k: (i, j), memory_space=vmem)

    out = pl.pallas_call(
        _spd_tiled_kernel,
        out_shape=jax.ShapeDtypeStruct((n, n), W.dtype),
        grid_spec=pltpu.PrefetchScalarGridSpec(
            num_scalar_prefetch=0,
            grid=(g, g, g),
            in_specs=[lhs_spec, rhs_spec],
            out_specs=out_spec,
            scratch_shapes=[pltpu.VMEM((tile, tile), jnp.float32)],
        ),
        compiler_params=pltpu.CompilerParams(
            dimension_semantics=("parallel", "parallel", "arbitrary"),
            vmem_limit_bytes=32 * 1024 * 1024,
        ),
    )(W, W)

    # Only the lower-triangular output blocks were computed (upper blocks are
    # zero); mirror the (exactly symmetric) result with one cheap pass.
    return jnp.tril(out) + jnp.tril(out, -1).T


def spd_matrix(W: jax.Array, *, tile: int = 256, single_block_max: int = 512):
    """Forward pass of SymmetricPositiveDefiniteMatrix: tril/abs-diag, L @ L.T."""
    n = W.shape[0]
    if n <= single_block_max:
        return _spd_single_block(W)
    n_pad = -(-n // tile) * tile
    Wp = W if n_pad == n else jnp.pad(W, ((0, n_pad - n), (0, n_pad - n)))
    out = _spd_tiled(Wp, tile)
    return out if n_pad == n else out[:n, :n]


# ---------------------------------------------------------------------------
# init + reference (glue, not the hot path)
# ---------------------------------------------------------------------------
def init_params(key: jax.Array, n: int) -> jax.Array:
    """Mirror the torch __init__: build SPD M, take its lower Cholesky factor."""
    A = jax.random.normal(key, (n, n), dtype=jnp.float32)
    M = A @ A.T + n * jnp.eye(n, dtype=jnp.float32)
    return jnp.linalg.cholesky(M)  # lower-triangular


def spd_reference(W: jax.Array) -> jax.Array:
    """Pure-JAX reference of the forward semantics."""
    L = jnp.tril(W, -1) + jnp.diag(jnp.abs(jnp.diag(W)))
    return L @ L.T


if __name__ == "__main__":
    key = jax.random.PRNGKey(0)
    k0, k1, k2, k3 = jax.random.split(key, 4)

    # 1) Faithful module usage: W = cholesky(M) for a small state dim (N = 8).
    W8 = init_params(k0, 8)
    out8 = jax.block_until_ready(spd_matrix(W8))
    assert jnp.allclose(out8, spd_reference(W8), rtol=2e-2, atol=1e-2), "N=8"
    assert jnp.allclose(out8, out8.T, rtol=1e-4, atol=1e-3), "N=8 symmetry"

    # 2) Generic parameter (nonzero upper triangle, mixed-sign diagonal) so
    #    the tril mask and abs-on-diagonal paths are genuinely exercised.
    Wg = jax.random.normal(k1, (8, 8), dtype=jnp.float32)
    outg = jax.block_until_ready(spd_matrix(Wg))
    assert jnp.allclose(outg, spd_reference(Wg), rtol=2e-2, atol=1e-2), "N=8 generic"

    # 3) Tiled path (forced): 3x3x3 grid of 128-tiles exercises diagonal-tile
    #    masking, the k-trim and the lower-triangle-only compute + mirror.
    W384 = jax.random.normal(k2, (384, 384), dtype=jnp.float32)
    out384 = jax.block_until_ready(spd_matrix(W384, tile=128, single_block_max=0))
    assert jnp.allclose(out384, spd_reference(W384), rtol=2e-2, atol=0.5), "N=384"
    assert jnp.allclose(out384, out384.T, rtol=1e-5, atol=1e-3), "N=384 symmetry"

    # 4) Tiled path with padding (N not a multiple of the tile).
    W200 = jax.random.normal(k3, (200, 200), dtype=jnp.float32)
    out200 = jax.block_until_ready(spd_matrix(W200, tile=128, single_block_max=0))
    assert jnp.allclose(out200, spd_reference(W200), rtol=2e-2, atol=0.5), "N=200"

    print("KERNEL_OK")
</pallas_src>

<mosaic_0001>
module attributes {stable_mosaic.version = 11 : i64} {
  func.func @_spd_single_block_kernel(%arg0: memref<8x8xf32, #tpu.memory_space<vmem>>, %arg1: memref<8x8xf32, #tpu.memory_space<vmem>>) attributes {dimension_semantics = [], scalar_prefetch = 0 : i64, scratch_operands = 0 : i64, tpu.core_type = #tpu.core_type<tc>} {
    %c0 = arith.constant 0 : index
    %c0_0 = arith.constant 0 : index
    %0 = vector.load %arg0[%c0, %c0_0] : memref<8x8xf32, #tpu.memory_space<vmem>>, vector<8x8xf32>
    %1 = tpu.iota {dimensions = array<i32: 0>} : vector<8x8xi32>
    %2 = tpu.iota {dimensions = array<i32: 1>} : vector<8x8xi32>
    %3 = arith.cmpi slt, %2, %1 : vector<8x8xi32>
    %4 = arith.cmpi eq, %2, %1 : vector<8x8xi32>
    %5 = math.absf %0 : vector<8x8xf32>
    %cst = arith.constant 0.000000e+00 : f32
    %6 = vector.broadcast %cst : f32 to vector<8x8xf32>
    %7 = arith.select %4, %5, %6 : vector<8x8xi1>, vector<8x8xf32>
    %8 = arith.select %3, %0, %7 : vector<8x8xi1>, vector<8x8xf32>
    %cst_1 = arith.constant dense<0.000000e+00> : vector<8x8xf32>
    %9 = tpu.matmul %8, %8, %cst_1 {dimension_numbers = #tpu.dot_dimension_numbers<[1], [1], [0], [0], [0, 0, 1, 0], [], []>} : vector<8x8xf32>, vector<8x8xf32>, vector<8x8xf32> -> vector<8x8xf32>
    %c0_2 = arith.constant 0 : index
    %c0_3 = arith.constant 0 : index
    %10 = vector.load %arg1[%c0_2, %c0_3] : memref<8x8xf32, #tpu.memory_space<vmem>>, vector<8x8xf32>
    tpu.vector_store %arg1[%c0_2, %c0_3], %9 {strides = array<i32>} : memref<8x8xf32, #tpu.memory_space<vmem>>, vector<8x8xf32>,
    return
  }
}

</mosaic_0001>

<llo_original>
// kernel: tpu_custom_call.1
$region0: #{tpu_custom_call.1}
  #allocation0 [shape = 'u32[]', space=smem, size = 0x4, offset = 0x4, fixed_abs, tag = 'smem constant byte address 0x4 - core index']
  #allocation1 [shape = 'u32[144,128]{1,0:T(1,128)}', space=vmem, size = 0x12000, scoped, tag = 'internal scratch']
  %s0 = inlined_call_operand.hbm [shape: f32[8,8], index: 0, kind: input, shape index: {}]
  %s1 = inlined_call_operand.hbm [shape: f32[8,8], index: 1, kind: output, shape index: {}]
  %s2 = sld [smem:[#allocation0]]
  $region18: #{tpu_custom_call.1} parent=0
    _
  %s4 = ssub.s32 1, %s2
  %s5 = scalar_select 0, %s4, %s2
  $region1: #{tpu_custom_call.1} parent=0
    #allocation2 [shape = 'u8[4096]{0}', space=vmem, size = 0x1000, scoped, tag = 'input window, operand 0, single buffered']
    #allocation3 [shape = 's32[1]{0}', space=sflag, size = 0x4, scoped, tag = 'scoped memory for tpu_custom_call.1']
    #allocation4 [shape = 's32[1]{0}', space=sflag, size = 0x4, scoped, tag = 'scoped memory for tpu_custom_call.1']
    #allocation5 [shape = 'u8[4096]{0}', space=vmem, size = 0x1000, scoped, tag = 'output window, operand 0, single buffered']
    %6 = vsyncpa [#allocation3], 0
    %7 = vsyncpa [#allocation4], 0
    // Predicated region
    $region2: #{tpu_custom_call.1} parent=1 // pred_check
      _
    $region3: #{tpu_custom_call.1} parent=1 // pred_check_branch
      %9 = sbr.rel (0) target = $region5
    $region4: #{tpu_custom_call.1} parent=1 // pred_region
      %s11 = ssub.s32 128, 128
      %12 = vsyncadd [#allocation3], %s11
      %s14 = sshll.u32 [#allocation2], 4
      %s15 = int_to_ptr.vmem [resolvable:$true] %s14
      %17 = dma.hbm_to_vmem [thread:$0]  %s0, 128, %s15, [#allocation3]
    $region5: #{tpu_custom_call.1} parent=1 // pred_fallthru
      _
    // Predicated region
    $region6: #{tpu_custom_call.1} parent=1 // pred_check
      _
    $region7: #{tpu_custom_call.1} parent=1 // pred_check_branch
      %19 = sbr.rel (0) target = $region9
    $region8: #{tpu_custom_call.1} parent=1 // pred_region
      %20 = dma.done [#allocation3], 128
    $region9: #{tpu_custom_call.1} parent=1 // pred_fallthru
      _
    %v21 = vld [vmem:[#allocation2] sm:$0xff]
    %v22 = vlaneseq
    %v23 = vshrl.u32 %v22, 7
    %v24 = vlaneseq
    %v25 = vand.u32 %v24, 127
    %vm26 = vcmp.lt.s32.totalorder %v25, %v23
    %vm27 = vcmp.eq.s32.totalorder %v25, %v23
    %v28 = vand.u32 2147483647, %v21
    %v29 = vsel %vm27, %v28, 0.0
    %v30 = vsel %vm26, %v21, %v29
    %vm31 = vcmask 64512
    %v33 = vsel %vm31, %v30, 0
    %35 = vmatprep.subr.mxu0 0.0
    %36 = vmatpush1.xpose.msra.mxu0 0.0
    %37 = vmatprep.subr.mxu0 0.0
    %38 = vmatpush1.xpose.msra.mxu0 0.0
    %39 = vmatprep.subr.mxu0 0.0
    %40 = vmatpush1.xpose.msra.mxu0 0.0
    %41 = vmatprep.subr.mxu0 0.0
    %42 = vmatpush1.xpose.msra.mxu0 0.0
    %43 = vmatprep.subr.mxu0 0.0
    %44 = vmatpush1.xpose.msra.mxu0 0.0
    %45 = vmatprep.subr.mxu0 0.0
    %46 = vmatpush1.xpose.msra.mxu0 0.0
    %47 = vmatprep.subr.mxu0 0.0
    %48 = vmatpush1.xpose.msra.mxu0 0.0
    %49 = vmatprep.subr.mxu0 0.0
    %50 = vmatpush1.xpose.msra.mxu0 0.0
    %51 = vmatprep.subr.mxu0 0.0
    %52 = vmatpush1.xpose.msra.mxu0 0.0
    %53 = vmatprep.subr.mxu0 0.0
    %54 = vmatpush1.xpose.msra.mxu0 0.0
    %55 = vmatprep.subr.mxu0 0.0
    %56 = vmatpush1.xpose.msra.mxu0 0.0
    %57 = vmatprep.subr.mxu0 0.0
    %58 = vmatpush1.xpose.msra.mxu0 0.0
    %59 = vmatprep.subr.mxu0 0.0
    %60 = vmatpush1.xpose.msra.mxu0 0.0
    %61 = vmatprep.subr.mxu0 0.0
    %62 = vmatpush1.xpose.msra.mxu0 0.0
    %63 = vmatprep.subr.mxu0 0.0
    %64 = vmatpush1.xpose.msra.mxu0 0.0
    %65 = vmatprep.subr.mxu0 0.0
    %66 = vmatpush1.xpose.msra.mxu0 %v33
    %67 = vmatprep.subr.mxu0 0.0
    %68 = vmatpush2.xpose.msra.mxu0 0.0
    %69 = vmatprep.subr.mxu0 0.0
    %70 = vmatpush2.xpose.msra.mxu0 0.0
    %71 = vmatprep.subr.mxu0 0.0
    %72 = vmatpush2.xpose.msra.mxu0 0.0
    %73 = vmatprep.subr.mxu0 0.0
    %74 = vmatpush2.xpose.msra.mxu0 0.0
    %75 = vmatprep.subr.mxu0 0.0
    %76 = vmatpush2.xpose.msra.mxu0 0.0
    %77 = vmatprep.subr.mxu0 0.0
    %78 = vmatpush2.xpose.msra.mxu0 0.0
    %79 = vmatprep.subr.mxu0 0.0
    %80 = vmatpush2.xpose.msra.mxu0 0.0
    %81 = vmatprep.subr.mxu0 0.0
    %82 = vmatpush2.xpose.msra.mxu0 0.0
    %83 = vmatprep.subr.mxu0 0.0
    %84 = vmatpush2.xpose.msra.mxu0 0.0
    %85 = vmatprep.subr.mxu0 0.0
    %86 = vmatpush2.xpose.msra.mxu0 0.0
    %87 = vmatprep.subr.mxu0 0.0
    %88 = vmatpush2.xpose.msra.mxu0 0.0
    %89 = vmatprep.subr.mxu0 0.0
    %90 = vmatpush2.xpose.msra.mxu0 0.0
    %91 = vmatprep.subr.mxu0 0.0
    %92 = vmatpush2.xpose.msra.mxu0 0.0
    %93 = vmatprep.subr.mxu0 0.0
    %94 = vmatpush2.xpose.msra.mxu0 0.0
    %95 = vmatprep.subr.mxu0 0.0
    %96 = vmatpush2.xpose.msra.mxu0 0.0
    %97 = vmatprep.subr.mxu0 0.0
    %98 = vmatpush2.xpose.msra.mxu0 0.0
    %99 = vmatprep.mubr.f32.mxu0 0.0
    %100 = vmatmul.mubr.f32.gmra.mxu0 %v33
    %v101 = vpop.f32.mrf.mxu0
    %v102 = vadd.f32 0.0, %v101
    %v103 = vpop.f32.mrf.mxu0
    %104 = vdwg.mxu0
    %105 = vst.msk [vmem:[#allocation5] sm:$0xff] %vm31, %v102
    // Predicated region
    $region10: #{tpu_custom_call.1} parent=1 // pred_check
      _
    $region11: #{tpu_custom_call.1} parent=1 // pred_check_branch
      %107 = sbr.rel (0) target = $region13
    $region12: #{tpu_custom_call.1} parent=1 // pred_region
      %s109 = ssub.s32 128, 128
      %110 = vsyncadd [#allocation4], %s109
      %s112 = sshll.u32 [#allocation5], 4
      %s113 = int_to_ptr.vmem [resolvable:$true] %s112
      %115 = dma.vmem_to_hbm [thread:$0]  %s113, 128, %s1, [#allocation4]
    $region13: #{tpu_custom_call.1} parent=1 // pred_fallthru
      _
    // Predicated region
    $region14: #{tpu_custom_call.1} parent=1 // pred_check
      _
    $region15: #{tpu_custom_call.1} parent=1 // pred_check_branch
      %117 = sbr.rel (0) target = $region17
    $region16: #{tpu_custom_call.1} parent=1 // pred_region
      %118 = dma.done [#allocation4], 128
    $region17: #{tpu_custom_call.1} parent=1 // pred_fallthru
      _
    %119 = vsyncpa [#allocation3], 1
    %120 = vsyncpa [#allocation4], 1

</llo_original>
